<compile_context>
chip_gen: v7x
topology: tpu7x:2x2x1
jax: 0.10.0
libtpu: 0.0.40
codegen_flags: <defaults>
</compile_context>

<pallas_src>
import functools

import jax
import jax.numpy as jnp
from jax.experimental import pallas as pl
from jax.experimental.pallas import tpu as pltpu


LANE = 128            # vreg lane width: fused conv/gate cols and classifier out padded to this
GATE_OFF = LANE // 2  # gate branch lives at lanes [GATE_OFF, GATE_OFF + H) of the fused matmul


# ----------------------------- kernel bodies ------------------------------- #

def _l2_normalize(v):
    # v * rsqrt(max(||v||^2, eps)) -- torch F.normalize(eps=1e-12) semantics, EUP rsqrt.
    ss = jnp.sum(v * v, axis=-1, keepdims=True)
    return v * jax.lax.rsqrt(jnp.maximum(ss, 1e-24))


def _encode_vecs(slab, wf, wcls, bcls):
    """Gated-CNN encoder on a pre-built im2col slab.

    slab : (N, S, KH_pad) bf16  lane-dense im2col of the embedded tokens
    wf   : (KH_pad, LANE) bf16  fused conv|gate weights (conv at [0,H), gate at [GATE_OFF, GATE_OFF+H))
    wcls : (LANE, LANE)   bf16  classifier weight (valid rows [0,H), valid cols [0,O), rest zero)
    bcls : (1, LANE)      f32   classifier bias (cols >= O are zero)
    returns (N, LANE) f32 sentence vectors (cols >= O are exactly zero).
    """
    n, s, kh = slab.shape
    # One MXU matmul (contraction = 128, native width) computes conv and gate branches.
    cg = jnp.dot(slab.reshape(n * s, kh), wf,
                 preferred_element_type=jnp.float32)               # (N*S, 128) f32
    # Swap lane halves so the gate lines up with the conv half; the whole-vreg multiply
    # then avoids any lane-misaligned slicing (roll runs on the XLU slot).
    gate = pltpu.roll(cg, shift=GATE_OFF, axis=1)
    gated = cg * jax.nn.sigmoid(gate)       # lanes [0,H): conv*sig(gate); other lanes junk/zero
    pooled = jnp.max(gated.reshape(n, s, LANE), axis=1)             # (N, 128) f32 max-pool
    # Classifier rows >= H are zero, so the junk lanes contribute exactly 0.
    return jnp.dot(pooled.astype(wcls.dtype), wcls,
                   preferred_element_type=jnp.float32) + bcls


def encode_kernel(x_ref, wf_ref, wcls_ref, bcls_ref, out_ref):
    out_ref[...] = _encode_vecs(x_ref[...], wf_ref[...], wcls_ref[...], bcls_ref[...])


def cosine_kernel(x_ref, wf_ref, wcls_ref, bcls_ref, out_ref):
    """Per batch tile: encode both sentences and emit 1 - cosine, lane-broadcast (tb, 128)."""
    g, tb, s, kh = x_ref.shape
    x = x_ref[...].reshape(g * tb, s, kh)
    vecs = _encode_vecs(x, wf_ref[...], wcls_ref[...], bcls_ref[...]).reshape(g, tb, LANE)
    v1 = _l2_normalize(vecs[0])
    v2 = _l2_normalize(vecs[1])
    dist = 1.0 - jnp.sum(v1 * v2, axis=-1, keepdims=True)           # (tb, 1)
    out_ref[...] = jnp.broadcast_to(dist, (tb, LANE))                # lane-dense unmasked store


def triplet_kernel(x_ref, wf_ref, wcls_ref, bcls_ref, out_ref):
    """Per batch tile: encode (a, p, n) and emit raw (ap - an), lane-broadcast (tb, 128)."""
    g, tb, s, kh = x_ref.shape
    x = x_ref[...].reshape(g * tb, s, kh)
    vecs = _encode_vecs(x, wf_ref[...], wcls_ref[...], bcls_ref[...]).reshape(g, tb, LANE)
    a = _l2_normalize(vecs[0])
    p = _l2_normalize(vecs[1])
    ng = _l2_normalize(vecs[2])
    ap = 1.0 - jnp.sum(a * p, axis=-1, keepdims=True)
    an = 1.0 - jnp.sum(a * ng, axis=-1, keepdims=True)
    out_ref[...] = jnp.broadcast_to(ap - an, (tb, LANE))             # lane-dense unmasked store


# ------------------------------ pallas_call glue --------------------------- #

# Whole-array resident VMEM inputs (no blocking / double-buffering for the small weights).
_RESIDENT = pl.BlockSpec(memory_space=pltpu.MemorySpace.VMEM)


def _build_slab(emb, tokens, ksize, kh_pad):
    """Embed + same-pad + im2col, zero-padded to a lane-dense (N, S, KH_pad) bf16 slab."""
    # TODO(synk): fuse the embedding gather into the kernel via scalar-prefetched token
    # ids for non-toy B*S; it currently stays as an XLA gather next to the launch.
    x = jnp.take(emb, tokens, axis=0)                                # (N, S, H) f32
    n, s, h = x.shape
    pad = (ksize - 1) // 2
    xp = jnp.pad(x, ((0, 0), (pad, pad), (0, 0)))
    slab = jnp.concatenate([xp[:, k:k + s, :] for k in range(ksize)], axis=-1)
    slab = jnp.pad(slab, ((0, 0), (0, 0), (0, kh_pad - ksize * h)))
    return slab.astype(jnp.bfloat16)


def _pick_batch_tile(n, row_bytes, budget=4 << 20):
    """Largest batch tile dividing n whose (double-buffered) block fits the VMEM budget,
    preferring >= 2 grid steps so v7x's two TensorCores both get work."""
    cap = max(8, budget // max(row_bytes, 1))
    fallback = None
    for tb in (1024, 512, 256, 128, 64, 32, 16, 8):
        if tb <= cap and n % tb == 0:
            if n // tb >= 2:
                return tb
            if fallback is None:
                fallback = tb
    return fallback if fallback is not None else n


def _compiler_params():
    return pltpu.CompilerParams(
        dimension_semantics=("parallel",),
        vmem_limit_bytes=32 << 20)   # explicit, well under v7x's 64 MiB physical VMEM


@functools.partial(jax.jit, static_argnames=("ksize", "out_size"))
def forward_encode(tokens, emb, wfused, wcls, bcls, *, ksize, out_size):
    n, seq_len = tokens.shape
    kh_pad = wfused.shape[0]
    slab = _build_slab(emb, tokens, ksize, kh_pad)                   # (N, S, 128) bf16
    tb = _pick_batch_tile(n, seq_len * kh_pad * 2)
    vecs = pl.pallas_call(
        encode_kernel,
        out_shape=jax.ShapeDtypeStruct((n, LANE), jnp.float32),
        grid_spec=pltpu.PrefetchScalarGridSpec(
            num_scalar_prefetch=0,
            grid=(n // tb,),
            in_specs=[
                pl.BlockSpec((tb, seq_len, kh_pad), lambda i: (i, 0, 0)),
                _RESIDENT, _RESIDENT, _RESIDENT,
            ],
            out_specs=pl.BlockSpec((tb, LANE), lambda i: (i, 0)),
        ),
        compiler_params=_compiler_params(),
    )(slab, wfused, wcls, bcls)
    return vecs[:, :out_size]


@functools.partial(jax.jit, static_argnames=("ksize",))
def forward_cosine(tok_a, tok_b, emb, wfused, wcls, bcls, *, ksize):
    batch, seq_len = tok_a.shape
    kh_pad = wfused.shape[0]
    tokens = jnp.stack([tok_a, tok_b], axis=0).reshape(2 * batch, seq_len)
    slab = _build_slab(emb, tokens, ksize, kh_pad).reshape(2, batch, seq_len, kh_pad)
    tb = _pick_batch_tile(batch, 2 * seq_len * kh_pad * 2)
    out = pl.pallas_call(
        cosine_kernel,
        out_shape=jax.ShapeDtypeStruct((batch, LANE), jnp.float32),
        grid_spec=pltpu.PrefetchScalarGridSpec(
            num_scalar_prefetch=0,
            grid=(batch // tb,),
            in_specs=[
                pl.BlockSpec((2, tb, seq_len, kh_pad), lambda i: (0, i, 0, 0)),
                _RESIDENT, _RESIDENT, _RESIDENT,
            ],
            out_specs=pl.BlockSpec((tb, LANE), lambda i: (i, 0)),
        ),
        compiler_params=_compiler_params(),
    )(slab, wfused, wcls, bcls)
    return out[:, 0]


@functools.partial(jax.jit, static_argnames=("ksize",))
def forward_triplet(tok_a, tok_p, tok_n, margin, emb, wfused, wcls, bcls, *, ksize):
    batch, seq_len = tok_a.shape
    kh_pad = wfused.shape[0]
    tokens = jnp.stack([tok_a, tok_p, tok_n], axis=0).reshape(3 * batch, seq_len)
    slab = _build_slab(emb, tokens, ksize, kh_pad).reshape(3, batch, seq_len, kh_pad)
    tb = _pick_batch_tile(batch, 3 * seq_len * kh_pad * 2)
    raw = pl.pallas_call(
        triplet_kernel,
        out_shape=jax.ShapeDtypeStruct((batch, LANE), jnp.float32),
        grid_spec=pltpu.PrefetchScalarGridSpec(
            num_scalar_prefetch=0,
            grid=(batch // tb,),
            in_specs=[
                pl.BlockSpec((3, tb, seq_len, kh_pad), lambda i: (0, i, 0, 0)),
                _RESIDENT, _RESIDENT, _RESIDENT,
            ],
            out_specs=pl.BlockSpec((tb, LANE), lambda i: (i, 0)),
        ),
        compiler_params=_compiler_params(),
    )(slab, wfused, wcls, bcls)
    # Margin add + masked mean are a negligible B-scalar reduction, finished wrapper-side
    # (per review) -- this also enables per-example tensor margins like the torch code.
    diff = raw[:, 0] + jnp.reshape(margin, (-1,))
    mask = (diff > 0.0).astype(jnp.float32)
    # TODO(synk): matches torch.mean(diff[diff > 0]) -> NaN when no triplet violates margin.
    return jnp.sum(diff * mask) / jnp.sum(mask)


# ------------------------------ model wrapper ------------------------------ #

class SiameseNetworkPallas:
    def __init__(self, config, key):
        H = config['hidden_size']
        K = config['kernel_size']
        O = config['output_size']
        assert K % 2 == 1, "same-pad Conv1d mirror assumes odd kernel_size"
        assert H <= GATE_OFF and O <= LANE
        vocab = config['vocab_size'] + 1        # TorchModel: vocab_size = cfg + 1
        n_emb = vocab + 1                       # nn.Embedding(vocab_size + 1, H)

        k1, k2, k3, k4, k5 = jax.random.split(key, 5)
        emb = 0.1 * jax.random.normal(k1, (n_emb, H), jnp.float32)
        self.emb = emb.at[0].set(0.0)           # padding_idx=0 row is zero
        scale = 1.0 / jnp.sqrt(jnp.float32(H * K))
        self.wc = scale * jax.random.normal(k2, (K, H, H), jnp.float32)   # conv (tap, in, out)
        self.wg = scale * jax.random.normal(k3, (K, H, H), jnp.float32)   # gate
        self.wcls = (1.0 / jnp.sqrt(jnp.float32(H))) * jax.random.normal(
            k4, (H, O), jnp.float32)
        self.bcls = 0.01 * jax.random.normal(k5, (1, O), jnp.float32)

        self.H, self.K, self.O = H, K, O
        self.KH_pad = ((K * H + LANE - 1) // LANE) * LANE   # 96 -> 128
        # Fused conv|gate weight, zero-padded to (KH_pad, 128): rows (tap, in), conv cols
        # [0,H), gate cols [GATE_OFF, GATE_OFF+H).  bf16 operands for the MXU.
        wf = jnp.zeros((self.KH_pad, LANE), jnp.float32)
        wf = wf.at[:K * H, :H].set(self.wc.reshape(K * H, H))
        wf = wf.at[:K * H, GATE_OFF:GATE_OFF + H].set(self.wg.reshape(K * H, H))
        self.wfused_pad = wf.astype(jnp.bfloat16)
        # Lane-dense classifier params; rows >= H and cols >= O MUST stay zero (the
        # normalize/cosine over the padded 128-wide vectors relies on it).
        self.wcls_pad = (jnp.zeros((LANE, LANE), jnp.float32)
                         .at[:H, :O].set(self.wcls)).astype(jnp.bfloat16)
        self.bcls_pad = jnp.zeros((1, LANE), jnp.float32).at[:, :O].set(self.bcls)

    def encode(self, tokens):
        return forward_encode(tokens, self.emb, self.wfused_pad, self.wcls_pad,
                              self.bcls_pad, ksize=self.K, out_size=self.O)

    def __call__(self, sentence1, sentence2=None, sentence3=None, margin=None):
        if sentence2 is None and sentence3 is None:
            return self.encode(sentence1)
        if sentence2 is None:
            return forward_cosine(sentence1, sentence3, self.emb, self.wfused_pad,
                                  self.wcls_pad, self.bcls_pad, ksize=self.K)
        if sentence3 is None:
            return forward_cosine(sentence1, sentence2, self.emb, self.wfused_pad,
                                  self.wcls_pad, self.bcls_pad, ksize=self.K)
        m = jnp.float32(0.1) if margin is None else jnp.asarray(margin, jnp.float32)
        return forward_triplet(sentence1, sentence2, sentence3, m, self.emb,
                               self.wfused_pad, self.wcls_pad, self.bcls_pad,
                               ksize=self.K)


# ------------------------------ pure-JAX reference ------------------------- #
# Mirrors the kernel's precision choices (bf16 MXU operands, f32 accumulation and
# f32 elementwise epilogue) so the comparison isolates the Pallas plumbing.

def _ref_encode(tokens, m):
    slab = _build_slab(m.emb, tokens, m.K, m.KH_pad)
    n, s, kh = slab.shape
    cg = jnp.dot(slab.reshape(n * s, kh), m.wfused_pad,
                 preferred_element_type=jnp.float32)
    conv = cg[:, :m.H]
    gate = cg[:, GATE_OFF:GATE_OFF + m.H]
    gated = conv * jax.nn.sigmoid(gate)
    pooled = jnp.max(gated.reshape(n, s, m.H), axis=1)
    pooled = jnp.pad(pooled, ((0, 0), (0, LANE - m.H)))
    out = jnp.dot(pooled.astype(jnp.bfloat16), m.wcls_pad,
                  preferred_element_type=jnp.float32) + m.bcls_pad
    return out[:, :m.O]


def _ref_cosine(s1, s2, m):
    v1 = _l2_normalize(_ref_encode(s1, m))
    v2 = _l2_normalize(_ref_encode(s2, m))
    return 1.0 - jnp.sum(v1 * v2, axis=-1)


def _ref_triplet(s1, s2, s3, m):
    a, p, n = (_l2_normalize(_ref_encode(s, m)) for s in (s1, s2, s3))
    ap = 1.0 - jnp.sum(a * p, axis=-1)
    an = 1.0 - jnp.sum(a * n, axis=-1)
    diff = ap - an + 0.1
    mask = (diff > 0).astype(jnp.float32)
    return jnp.sum(diff * mask) / jnp.sum(mask)


# ----------------------------------- main ----------------------------------- #

if __name__ == "__main__":
    config = dict(hidden_size=32, kernel_size=3, vocab_size=30, output_size=32,
                  model_type='gated_cnn', num_layers=1, use_bert=False,
                  pooling_style='max')

    key = jax.random.PRNGKey(0)
    kp, k1, k2, k3 = jax.random.split(key, 4)

    model = SiameseNetworkPallas(config, kp)

    B, S = 4, 8
    n_tokens = config['vocab_size'] + 2
    sentence1 = jax.random.randint(k1, (B, S), 0, n_tokens, dtype=jnp.int32)
    sentence2 = jax.random.randint(k2, (B, S), 0, n_tokens, dtype=jnp.int32)
    sentence3 = jax.random.randint(k3, (B, S), 0, n_tokens, dtype=jnp.int32)

    # Triplet-loss path (anchor, positive, negative): one gridded pallas_call.
    loss = jax.block_until_ready(model(sentence1, sentence2, sentence3))
    # Cosine-distance path (two sentences): one gridded pallas_call.
    dist = jax.block_until_ready(model(sentence1, sentence2))
    # Encode-only path.
    vecs = jax.block_until_ready(model(sentence1))

    # Correctness checks against the precision-matched pure-JAX reference.
    vec_ref = _ref_encode(sentence1, model)
    dist_ref = _ref_cosine(sentence1, sentence2, model)
    loss_ref = _ref_triplet(sentence1, sentence2, sentence3, model)

    assert vecs.shape == (B, config['output_size'])
    assert dist.shape == (B,)
    assert jnp.allclose(vecs, vec_ref, rtol=5e-3, atol=5e-3), (vecs, vec_ref)
    assert jnp.allclose(dist, dist_ref, rtol=5e-3, atol=5e-3), (dist, dist_ref)
    assert jnp.allclose(loss, loss_ref, rtol=5e-3, atol=5e-3), (loss, loss_ref)

    print("KERNEL_OK")
</pallas_src>

<mosaic_0001>
module attributes {stable_mosaic.version = 11 : i64} {
  func.func @triplet_kernel(%arg0: i32, %arg1: memref<3x4x8x128xbf16, #tpu.memory_space<vmem>>, %arg2: memref<128x128xbf16, #tpu.memory_space<vmem>>, %arg3: memref<128x128xbf16, #tpu.memory_space<vmem>>, %arg4: memref<1x128xf32, #tpu.memory_space<vmem>>, %arg5: memref<4x128xf32, #tpu.memory_space<vmem>>) attributes {dimension_semantics = [#tpu.dimension_semantics<parallel>], iteration_bounds = array<i64: 1>, scalar_prefetch = 0 : i64, scratch_operands = 0 : i64, tpu.core_type = #tpu.core_type<tc>, window_params = [{transform_indices = @transform_0, window_bounds = array<i64: 3, 4, 8, 128>}, {pipeline_mode = #tpu.pipeline_mode<synchronous>, transform_indices = @transform_1, window_bounds = array<i64: 128, 128>}, {pipeline_mode = #tpu.pipeline_mode<synchronous>, transform_indices = @transform_2, window_bounds = array<i64: 128, 128>}, {pipeline_mode = #tpu.pipeline_mode<synchronous>, transform_indices = @transform_3, window_bounds = array<i64: 1, 128>}, {transform_indices = @transform_4, window_bounds = array<i64: 4, 128>}]} {
    %c0 = arith.constant 0 : index
    %c0_0 = arith.constant 0 : index
    %c0_1 = arith.constant 0 : index
    %c0_2 = arith.constant 0 : index
    %0 = vector.load %arg1[%c0, %c0_0, %c0_1, %c0_2] : memref<3x4x8x128xbf16, #tpu.memory_space<vmem>>, vector<3x4x8x128xbf16>
    %1 = vector.shape_cast %0 : vector<3x4x8x128xbf16> to vector<12x8x128xbf16>
    %c0_3 = arith.constant 0 : index
    %c0_4 = arith.constant 0 : index
    %2 = vector.load %arg2[%c0_3, %c0_4] : memref<128x128xbf16, #tpu.memory_space<vmem>>, vector<128x128xbf16>
    %c0_5 = arith.constant 0 : index
    %c0_6 = arith.constant 0 : index
    %3 = vector.load %arg3[%c0_5, %c0_6] : memref<128x128xbf16, #tpu.memory_space<vmem>>, vector<128x128xbf16>
    %c0_7 = arith.constant 0 : index
    %c0_8 = arith.constant 0 : index
    %4 = vector.load %arg4[%c0_7, %c0_8] : memref<1x128xf32, #tpu.memory_space<vmem>>, vector<1x128xf32>
    %5 = vector.shape_cast %1 : vector<12x8x128xbf16> to vector<96x128xbf16>
    %cst = arith.constant dense<0.000000e+00> : vector<96x128xf32>
    %6 = tpu.matmul %5, %2, %cst {dimension_numbers = #tpu.dot_dimension_numbers<[1], [0], [0], [1], [0, 0, 1, 1], [], []>} : vector<96x128xbf16>, vector<128x128xbf16>, vector<96x128xf32> -> vector<96x128xf32>
    %c64_i32 = arith.constant 64 : i32
    %7 = tpu.dynamic_rotate %6 by %c64_i32 dim 1 : vector<96x128xf32>, i32 -> vector<96x128xf32>
    %8 = arith.negf %7 : vector<96x128xf32>
    %9 = math.exp %8 : vector<96x128xf32>
    %cst_9 = arith.constant 1.000000e+00 : f32
    %10 = vector.broadcast %cst_9 : f32 to vector<96x128xf32>
    %11 = arith.addf %10, %9 : vector<96x128xf32>
    %12 = arith.divf %10, %11 : vector<96x128xf32>
    %13 = arith.mulf %6, %12 : vector<96x128xf32>
    %14 = vector.shape_cast %13 : vector<96x128xf32> to vector<12x8x128xf32>
    %cst_10 = arith.constant dense<0xFF800000> : vector<12x128xf32>
    %15 = vector.multi_reduction <maximumf>, %14, %cst_10 [1] : vector<12x8x128xf32> to vector<12x128xf32>
    %16 = arith.truncf %15 : vector<12x128xf32> to vector<12x128xbf16>
    %cst_11 = arith.constant dense<0.000000e+00> : vector<12x128xf32>
    %17 = tpu.matmul %16, %3, %cst_11 {dimension_numbers = #tpu.dot_dimension_numbers<[1], [0], [0], [1], [0, 0, 1, 1], [], []>} : vector<12x128xbf16>, vector<128x128xbf16>, vector<12x128xf32> -> vector<12x128xf32>
    %18 = vector.broadcast %4 : vector<1x128xf32> to vector<12x128xf32>
    %19 = arith.addf %17, %18 : vector<12x128xf32>
    %20 = vector.shape_cast %19 : vector<12x128xf32> to vector<3x4x128xf32>
    %21 = vector.extract_strided_slice %20 {offsets = [0, 0, 0], sizes = [1, 4, 128], strides = [1, 1, 1]} : vector<3x4x128xf32> to vector<1x4x128xf32>
    %22 = vector.shape_cast %21 : vector<1x4x128xf32> to vector<4x128xf32>
    %23 = arith.mulf %22, %22 : vector<4x128xf32>
    %cst_12 = arith.constant dense<0.000000e+00> : vector<4xf32>
    %24 = vector.multi_reduction <add>, %23, %cst_12 [1] : vector<4x128xf32> to vector<4xf32>
    %25 = vector.shape_cast %24 : vector<4xf32> to vector<4x1xf32>
    %cst_13 = arith.constant 1.000000e-24 : f32
    %26 = vector.broadcast %cst_13 : f32 to vector<4x1xf32>
    %27 = arith.maximumf %25, %26 : vector<4x1xf32>
    %28 = math.rsqrt %27 : vector<4x1xf32>
    %29 = vector.broadcast %28 : vector<4x1xf32> to vector<4x128xf32>
    %30 = arith.mulf %22, %29 : vector<4x128xf32>
    %31 = vector.extract_strided_slice %20 {offsets = [1, 0, 0], sizes = [1, 4, 128], strides = [1, 1, 1]} : vector<3x4x128xf32> to vector<1x4x128xf32>
    %32 = vector.shape_cast %31 : vector<1x4x128xf32> to vector<4x128xf32>
    %33 = arith.mulf %32, %32 : vector<4x128xf32>
    %cst_14 = arith.constant dense<0.000000e+00> : vector<4xf32>
    %34 = vector.multi_reduction <add>, %33, %cst_14 [1] : vector<4x128xf32> to vector<4xf32>
    %35 = vector.shape_cast %34 : vector<4xf32> to vector<4x1xf32>
    %cst_15 = arith.constant 1.000000e-24 : f32
    %36 = vector.broadcast %cst_15 : f32 to vector<4x1xf32>
    %37 = arith.maximumf %35, %36 : vector<4x1xf32>
    %38 = math.rsqrt %37 : vector<4x1xf32>
    %39 = vector.broadcast %38 : vector<4x1xf32> to vector<4x128xf32>
    %40 = arith.mulf %32, %39 : vector<4x128xf32>
    %41 = vector.extract_strided_slice %20 {offsets = [2, 0, 0], sizes = [1, 4, 128], strides = [1, 1, 1]} : vector<3x4x128xf32> to vector<1x4x128xf32>
    %42 = vector.shape_cast %41 : vector<1x4x128xf32> to vector<4x128xf32>
    %43 = arith.mulf %42, %42 : vector<4x128xf32>
    %cst_16 = arith.constant dense<0.000000e+00> : vector<4xf32>
    %44 = vector.multi_reduction <add>, %43, %cst_16 [1] : vector<4x128xf32> to vector<4xf32>
    %45 = vector.shape_cast %44 : vector<4xf32> to vector<4x1xf32>
    %cst_17 = arith.constant 1.000000e-24 : f32
    %46 = vector.broadcast %cst_17 : f32 to vector<4x1xf32>
    %47 = arith.maximumf %45, %46 : vector<4x1xf32>
    %48 = math.rsqrt %47 : vector<4x1xf32>
    %49 = vector.broadcast %48 : vector<4x1xf32> to vector<4x128xf32>
    %50 = arith.mulf %42, %49 : vector<4x128xf32>
    %51 = arith.mulf %30, %40 : vector<4x128xf32>
    %cst_18 = arith.constant dense<0.000000e+00> : vector<4xf32>
    %52 = vector.multi_reduction <add>, %51, %cst_18 [1] : vector<4x128xf32> to vector<4xf32>
    %53 = vector.shape_cast %52 : vector<4xf32> to vector<4x1xf32>
    %cst_19 = arith.constant 1.000000e+00 : f32
    %54 = vector.broadcast %cst_19 : f32 to vector<4x1xf32>
    %55 = arith.subf %54, %53 : vector<4x1xf32>
    %56 = arith.mulf %30, %50 : vector<4x128xf32>
    %cst_20 = arith.constant dense<0.000000e+00> : vector<4xf32>
    %57 = vector.multi_reduction <add>, %56, %cst_20 [1] : vector<4x128xf32> to vector<4xf32>
    %58 = vector.shape_cast %57 : vector<4xf32> to vector<4x1xf32>
    %cst_21 = arith.constant 1.000000e+00 : f32
    %59 = vector.broadcast %cst_21 : f32 to vector<4x1xf32>
    %60 = arith.subf %59, %58 : vector<4x1xf32>
    %61 = arith.subf %55, %60 : vector<4x1xf32>
    %62 = vector.shape_cast %61 : vector<4x1xf32> to vector<4x1xf32>
    %63 = vector.broadcast %62 : vector<4x1xf32> to vector<4x128xf32>
    %c0_22 = arith.constant 0 : index
    %c0_23 = arith.constant 0 : index
    %64 = vector.load %arg5[%c0_22, %c0_23] : memref<4x128xf32, #tpu.memory_space<vmem>>, vector<4x128xf32>
    tpu.vector_store %arg5[%c0_22, %c0_23], %63 {strides = array<i32>} : memref<4x128xf32, #tpu.memory_space<vmem>>, vector<4x128xf32>,
    return
  }
  func.func @transform_0(%arg0: i32) -> (i32, i32, i32, i32) {
    %c0_i32 = arith.constant 0 : i32
    %c0_i32_0 = arith.constant 0 : i32
    %c0_i32_1 = arith.constant 0 : i32
    %c0_i32_2 = arith.constant 0 : i32
    return %c0_i32, %arg0, %c0_i32_0, %c0_i32_1 : i32, i32, i32, i32
  }
  func.func @transform_1(%arg0: i32) -> (i32, i32) {
    %c0_i32 = arith.constant 0 : i32
    %c0_i32_0 = arith.constant 0 : i32
    %c0_i32_1 = arith.constant 0 : i32
    return %c0_i32, %c0_i32_0 : i32, i32
  }
  func.func @transform_2(%arg0: i32) -> (i32, i32) {
    %c0_i32 = arith.constant 0 : i32
    %c0_i32_0 = arith.constant 0 : i32
    %c0_i32_1 = arith.constant 0 : i32
    return %c0_i32, %c0_i32_0 : i32, i32
  }
  func.func @transform_3(%arg0: i32) -> (i32, i32) {
    %c0_i32 = arith.constant 0 : i32
    %c0_i32_0 = arith.constant 0 : i32
    %c0_i32_1 = arith.constant 0 : i32
    return %c0_i32, %c0_i32_0 : i32, i32
  }
  func.func @transform_4(%arg0: i32) -> (i32, i32) {
    %c0_i32 = arith.constant 0 : i32
    %c0_i32_0 = arith.constant 0 : i32
    return %arg0, %c0_i32 : i32, i32
  }
}

</mosaic_0001>

<llo_original>
// kernel: forward_triplet.1
$region0: #{forward_triplet.1}
  #allocation0 [shape = 'u32[]', space=smem, size = 0x4, offset = 0x4, fixed_abs, tag = 'smem constant byte address 0x4 - core index']
  #allocation1 [shape = 'u32[144,128]{1,0:T(1,128)}', space=vmem, size = 0x12000, scoped, tag = 'internal scratch']
  %s0 = inlined_call_operand.vmem [shape: bf16[3,4,8,128], index: 0, kind: input, shape index: {}]
  %s1 = inlined_call_operand.vmem [shape: bf16[128,128], index: 1, kind: input, shape index: {}]
  %s2 = inlined_call_operand.vmem [shape: bf16[128,128], index: 2, kind: input, shape index: {}]
  %s3 = inlined_call_operand.vmem [shape: f32[1,128], index: 3, kind: input, shape index: {}]
  %s4 = inlined_call_operand.vmem [shape: f32[4,128], index: 4, kind: output, shape index: {}]
  %s5 = sld [smem:[#allocation0]]
  $region26: #{forward_triplet.1} parent=0
    _
  %s7 = ssub.s32 1, %s5
  %s8 = scalar_select 0, %s7, %s5
  // Predicated region
  $region2: #{forward_triplet.1} parent=0 // pred_check
    _
  $region3: #{forward_triplet.1} parent=0 // pred_check_branch
    %10 = sbr.rel (0) target = $region5
  $region4: #{forward_triplet.1} parent=0 // pred_region
    _
  $region5: #{forward_triplet.1} parent=0 // pred_fallthru
    _
  // Predicated region
  $region6: #{forward_triplet.1} parent=0 // pred_check
    _
  $region7: #{forward_triplet.1} parent=0 // pred_check_branch
    %12 = sbr.rel (0) target = $region9
  $region8: #{forward_triplet.1} parent=0 // pred_region
    _
  $region9: #{forward_triplet.1} parent=0 // pred_fallthru
    _
  // Predicated region
  $region10: #{forward_triplet.1} parent=0 // pred_check
    _
  $region11: #{forward_triplet.1} parent=0 // pred_check_branch
    %14 = sbr.rel (0) target = $region13
  $region12: #{forward_triplet.1} parent=0 // pred_region
    _
  $region13: #{forward_triplet.1} parent=0 // pred_fallthru
    _
  // Predicated region
  $region14: #{forward_triplet.1} parent=0 // pred_check
    _
  $region15: #{forward_triplet.1} parent=0 // pred_check_branch
    %16 = sbr.rel (0) target = $region17
  $region16: #{forward_triplet.1} parent=0 // pred_region
    _
  $region17: #{forward_triplet.1} parent=0 // pred_fallthru
    _
  %v18 = vld [vmem:[%s0] sm:$0xf]
  %v19 = vld [vmem:[%s0 + $0x4] sm:$0xf]
  %v20 = vld [vmem:[%s0 + $0x8] sm:$0xf]
  %v21 = vld [vmem:[%s0 + $0xc] sm:$0xf]
  %v22 = vld [vmem:[%s0 + $0x10] sm:$0xf]
  %v23 = vld [vmem:[%s0 + $0x14] sm:$0xf]
  %v24 = vld [vmem:[%s0 + $0x18] sm:$0xf]
  %v25 = vld [vmem:[%s0 + $0x1c] sm:$0xf]
  %v26 = vld [vmem:[%s0 + $0x20] sm:$0xf]
  %v27 = vld [vmem:[%s0 + $0x24] sm:$0xf]
  %v28 = vld [vmem:[%s0 + $0x28] sm:$0xf]
  %v29 = vld [vmem:[%s0 + $0x2c] sm:$0xf]
  %v30 = vld [vmem:[%s1] sm:$0xf]
  %v31 = vld [vmem:[%s1 + $0x4] sm:$0xf]
  %v32 = vld [vmem:[%s1 + $0x8] sm:$0xf]
  %v33 = vld [vmem:[%s1 + $0xc] sm:$0xf]
  %v34 = vld [vmem:[%s1 + $0x10] sm:$0xf]
  %v35 = vld [vmem:[%s1 + $0x14] sm:$0xf]
  %v36 = vld [vmem:[%s1 + $0x18] sm:$0xf]
  %v37 = vld [vmem:[%s1 + $0x1c] sm:$0xf]
  %v38 = vld [vmem:[%s1 + $0x20] sm:$0xf]
  %v39 = vld [vmem:[%s1 + $0x24] sm:$0xf]
  %v40 = vld [vmem:[%s1 + $0x28] sm:$0xf]
  %v41 = vld [vmem:[%s1 + $0x2c] sm:$0xf]
  %v42 = vld [vmem:[%s1 + $0x30] sm:$0xf]
  %v43 = vld [vmem:[%s1 + $0x34] sm:$0xf]
  %v44 = vld [vmem:[%s1 + $0x38] sm:$0xf]
  %v45 = vld [vmem:[%s1 + $0x3c] sm:$0xf]
  %v46 = vld [vmem:[%s2] sm:$0xf]
  %v47 = vld [vmem:[%s2 + $0x4] sm:$0xf]
  %v48 = vld [vmem:[%s2 + $0x8] sm:$0xf]
  %v49 = vld [vmem:[%s2 + $0xc] sm:$0xf]
  %v50 = vld [vmem:[%s2 + $0x10] sm:$0xf]
  %v51 = vld [vmem:[%s2 + $0x14] sm:$0xf]
  %v52 = vld [vmem:[%s2 + $0x18] sm:$0xf]
  %v53 = vld [vmem:[%s2 + $0x1c] sm:$0xf]
  %v54 = vld [vmem:[%s2 + $0x20] sm:$0xf]
  %v55 = vld [vmem:[%s2 + $0x24] sm:$0xf]
  %v56 = vld [vmem:[%s2 + $0x28] sm:$0xf]
  %v57 = vld [vmem:[%s2 + $0x2c] sm:$0xf]
  %v58 = vld [vmem:[%s2 + $0x30] sm:$0xf]
  %v59 = vld [vmem:[%s2 + $0x34] sm:$0xf]
  %v60 = vld [vmem:[%s2 + $0x38] sm:$0xf]
  %v61 = vld [vmem:[%s2 + $0x3c] sm:$0xf]
  %v62 = vld [vmem:[%s3] sm:$0x1]
  %v75 = vunpack.c.l.b16 %v18
  %v76 = vunpack.c.l.b16 %v19
  %v77 = vunpack.c.l.b16 %v20
  %v78 = vunpack.c.l.b16 %v21
  %v79 = vunpack.c.l.b16 %v22
  %v80 = vunpack.c.l.b16 %v23
  %v81 = vunpack.c.l.b16 %v24
  %v82 = vunpack.c.l.b16 %v25
  %v83 = vunpack.c.l.b16 %v26
  %v84 = vunpack.c.l.b16 %v27
  %v85 = vunpack.c.l.b16 %v28
  %v86 = vunpack.c.l.b16 %v29
  %v87 = vpack.c.b16 %v76, %v75
  %v88 = vpack.c.b16 %v78, %v77
  %v89 = vpack.c.b16 %v80, %v79
  %v90 = vpack.c.b16 %v82, %v81
  %v91 = vpack.c.b16 %v84, %v83
  %v92 = vpack.c.b16 %v86, %v85
  %v115 = vunpack.c.l.b16 %v30
  %v116 = vunpack.c.l.b16 %v31
  %v117 = vunpack.c.l.b16 %v32
  %v118 = vunpack.c.l.b16 %v33
  %v119 = vunpack.c.l.b16 %v34
  %v120 = vunpack.c.l.b16 %v35
  %v121 = vunpack.c.l.b16 %v36
  %v122 = vunpack.c.l.b16 %v37
  %v123 = vunpack.c.l.b16 %v38
  %v124 = vunpack.c.l.b16 %v39
  %v125 = vunpack.c.l.b16 %v40
  %v126 = vunpack.c.l.b16 %v41
  %v127 = vunpack.c.l.b16 %v42
  %v128 = vunpack.c.l.b16 %v43
  %v129 = vunpack.c.l.b16 %v44
  %v130 = vunpack.c.l.b16 %v45
  %v131 = vpack.c.b16 %v116, %v115
  %v132 = vpack.c.b16 %v118, %v117
  %v133 = vpack.c.b16 %v120, %v119
  %v134 = vpack.c.b16 %v122, %v121
  %v135 = vpack.c.b16 %v124, %v123
  %v136 = vpack.c.b16 %v126, %v125
  %v137 = vpack.c.b16 %v128, %v127
  %v138 = vpack.c.b16 %v130, %v129
  %147 = vmatprep.subr.bf16.mxu0 0
  %148 = vmatpush1.bf16.msra.mxu0 %v131
  %149 = vmatprep.subr.bf16.mxu0 0
  %150 = vmatpush1.bf16.msra.mxu0 %v132
  %151 = vmatprep.subr.bf16.mxu0 0
  %152 = vmatpush1.bf16.msra.mxu0 %v133
  %153 = vmatprep.subr.bf16.mxu0 0
  %154 = vmatpush1.bf16.msra.mxu0 %v134
  %155 = vmatprep.subr.bf16.mxu0 0
  %156 = vmatpush1.bf16.msra.mxu0 %v135
  %157 = vmatprep.subr.bf16.mxu0 0
  %158 = vmatpush1.bf16.msra.mxu0 %v136
  %159 = vmatprep.subr.bf16.mxu0 0
  %160 = vmatpush1.bf16.msra.mxu0 %v137
  %161 = vmatprep.subr.bf16.mxu0 0
  %162 = vmatpush1.bf16.msra.mxu0 %v138
  %163 = vmatprep.subr.bf16.mxu0 0
  %164 = vmatpush1.bf16.msra.mxu0 0
  %165 = vmatprep.subr.bf16.mxu0 0
  %166 = vmatpush1.bf16.msra.mxu0 0
  %167 = vmatprep.subr.bf16.mxu0 0
  %168 = vmatpush1.bf16.msra.mxu0 0
  %169 = vmatprep.subr.bf16.mxu0 0
  %170 = vmatpush1.bf16.msra.mxu0 0
  %171 = vmatprep.subr.bf16.mxu0 0
  %172 = vmatpush1.bf16.msra.mxu0 0
  %173 = vmatprep.subr.bf16.mxu0 0
  %174 = vmatpush1.bf16.msra.mxu0 0
  %175 = vmatprep.subr.bf16.mxu0 0
  %176 = vmatpush1.bf16.msra.mxu0 0
  %177 = vmatprep.subr.bf16.mxu0 0
  %178 = vmatpush1.bf16.msra.mxu0 0
  %179 = vmatprep.mubr.bf16.mxu0 0
  %180 = vmatmul.mubr.bf16.gmra.mrb[0].mxu0 %v87
  %v181 = vpop.f32.mrb[0].mxu0
  %v182 = vadd.f32 0.0, %v181
  %v183 = vpop.f32.mrb[0].mxu0
  %v184 = vpop.f32.mrb[0].mxu0
  %v185 = vadd.f32 0.0, %v184
  %v186 = vpop.f32.mrb[0].mxu0
  %187 = vmatprep.mubr.bf16.mxu0 0
  %188 = vmatmul.mubr.bf16.gmra.mrb[0].mxu0 %v88
  %v189 = vpop.f32.mrb[0].mxu0
  %v190 = vadd.f32 0.0, %v189
  %v191 = vpop.f32.mrb[0].mxu0
  %v192 = vpop.f32.mrb[0].mxu0
  %v193 = vadd.f32 0.0, %v192
  %v194 = vpop.f32.mrb[0].mxu0
  %195 = vmatprep.mubr.bf16.mxu0 0
  %196 = vmatmul.mubr.bf16.gmra.mrb[0].mxu0 %v89
  %v197 = vpop.f32.mrb[0].mxu0
  %v198 = vadd.f32 0.0, %v197
  %v199 = vpop.f32.mrb[0].mxu0
  %v200 = vpop.f32.mrb[0].mxu0
  %v201 = vadd.f32 0.0, %v200
  %v202 = vpop.f32.mrb[0].mxu0
  %203 = vmatprep.mubr.bf16.mxu0 0
  %204 = vmatmul.mubr.bf16.gmra.mrb[0].mxu0 %v90
  %v205 = vpop.f32.mrb[0].mxu0
  %v206 = vadd.f32 0.0, %v205
  %v207 = vpop.f32.mrb[0].mxu0
  %v208 = vpop.f32.mrb[0].mxu0
  %v209 = vadd.f32 0.0, %v208
  %v210 = vpop.f32.mrb[0].mxu0
  %211 = vmatprep.mubr.bf16.mxu0 0
  %212 = vmatmul.mubr.bf16.gmra.mrb[0].mxu0 %v91
  %v213 = vpop.f32.mrb[0].mxu0
  %v214 = vadd.f32 0.0, %v213
  %v215 = vpop.f32.mrb[0].mxu0
  %v216 = vpop.f32.mrb[0].mxu0
  %v217 = vadd.f32 0.0, %v216
  %v218 = vpop.f32.mrb[0].mxu0
  %219 = vmatprep.mubr.bf16.mxu0 0
  %220 = vmatmul.mubr.bf16.gmra.mrb[0].mxu0 %v92
  %v221 = vpop.f32.mrb[0].mxu0
  %v222 = vadd.f32 0.0, %v221
  %v223 = vpop.f32.mrb[0].mxu0
  %v224 = vpop.f32.mrb[0].mxu0
  %v225 = vadd.f32 0.0, %v224
  %v226 = vpop.f32.mrb[0].mxu0
  %227 = vdwg.mxu0
  %228 = vrot.lane.b32.xlu0 %v182, 64
  %v229 = vpop.permute.xlu0 %228
  %230 = vrot.lane.b32.xlu0 %v185, 64
  %v231 = vpop.permute.xlu0 %230
  %232 = vrot.lane.b32.xlu0 %v190, 64
  %v233 = vpop.permute.xlu0 %232
  %234 = vrot.lane.b32.xlu0 %v193, 64
  %v235 = vpop.permute.xlu0 %234
  %236 = vrot.lane.b32.xlu0 %v198, 64
  %v237 = vpop.permute.xlu0 %236
  %238 = vrot.lane.b32.xlu0 %v201, 64
  %v239 = vpop.permute.xlu0 %238
  %240 = vrot.lane.b32.xlu0 %v206, 64
  %v241 = vpop.permute.xlu0 %240
  %242 = vrot.lane.b32.xlu0 %v209, 64
  %v243 = vpop.permute.xlu0 %242
  %244 = vrot.lane.b32.xlu0 %v214, 64
  %v245 = vpop.permute.xlu0 %244
  %246 = vrot.lane.b32.xlu0 %v217, 64
  %v247 = vpop.permute.xlu0 %246
  %248 = vrot.lane.b32.xlu0 %v222, 64
  %v249 = vpop.permute.xlu0 %248
  %250 = vrot.lane.b32.xlu0 %v225, 64
  %v251 = vpop.permute.xlu0 %250
  %v252 = vxor.u32 %v229, 2147483648
  %v253 = vxor.u32 %v231, 2147483648
  %v254 = vxor.u32 %v233, 2147483648
  %v255 = vxor.u32 %v235, 2147483648
  %v256 = vxor.u32 %v237, 2147483648
  %v257 = vxor.u32 %v239, 2147483648
  %v258 = vxor.u32 %v241, 2147483648
  %v259 = vxor.u32 %v243, 2147483648
  %v260 = vxor.u32 %v245, 2147483648
  %v261 = vxor.u32 %v247, 2147483648
  %v262 = vxor.u32 %v249, 2147483648
  %v263 = vxor.u32 %v251, 2147483648
  %v264 = vmul.f32 %v252, 1.442695
  %v265 = vpow.pop %v264
  %v266 = vmul.f32 %v253, 1.442695
  %v267 = vpow.pop %v266
  %v268 = vmul.f32 %v254, 1.442695
  %v269 = vpow.pop %v268
  %v270 = vmul.f32 %v255, 1.442695
  %v271 = vpow.pop %v270
  %v272 = vmul.f32 %v256, 1.442695
  %v273 = vpow.pop %v272
  %v274 = vmul.f32 %v257, 1.442695
  %v275 = vpow.pop %v274
  %v276 = vmul.f32 %v258, 1.442695
  %v277 = vpow.pop %v276
  %v278 = vmul.f32 %v259, 1.442695
  %v279 = vpow.pop %v278
  %v280 = vmul.f32 %v260, 1.442695
  %v281 = vpow.pop %v280
  %v282 = vmul.f32 %v261, 1.442695
  %v283 = vpow.pop %v282
  %v284 = vmul.f32 %v262, 1.442695
  %v285 = vpow.pop %v284
  %v286 = vmul.f32 %v263, 1.442695
  %v287 = vpow.pop %v286
  %v288 = vadd.f32 %v265, 1.0
  %v289 = vadd.f32 %v267, 1.0
  %v290 = vadd.f32 %v269, 1.0
  %v291 = vadd.f32 %v271, 1.0
  %v292 = vadd.f32 %v273, 1.0
  %v293 = vadd.f32 %v275, 1.0
  %v294 = vadd.f32 %v277, 1.0
  %v295 = vadd.f32 %v279, 1.0
  %v296 = vadd.f32 %v281, 1.0
  %v297 = vadd.f32 %v283, 1.0
  %v298 = vadd.f32 %v285, 1.0
  %v299 = vadd.f32 %v287, 1.0
  %v300 = vrcp.pop %v288
  %v301 = vmul.f32 1.0, %v300
  %v302 = vrcp.pop %v289
  %v303 = vmul.f32 1.0, %v302
  %v304 = vrcp.pop %v290
  %v305 = vmul.f32 1.0, %v304
  %v306 = vrcp.pop %v291
  %v307 = vmul.f32 1.0, %v306
  %v308 = vrcp.pop %v292
  %v309 = vmul.f32 1.0, %v308
  %v310 = vrcp.pop %v293
  %v311 = vmul.f32 1.0, %v310
  %v312 = vrcp.pop %v294
  %v313 = vmul.f32 1.0, %v312
  %v314 = vrcp.pop %v295
  %v315 = vmul.f32 1.0, %v314
  %v316 = vrcp.pop %v296
  %v317 = vmul.f32 1.0, %v316
  %v318 = vrcp.pop %v297
  %v319 = vmul.f32 1.0, %v318
  %v320 = vrcp.pop %v298
  %v321 = vmul.f32 1.0, %v320
  %v322 = vrcp.pop %v299
  %v323 = vmul.f32 1.0, %v322
  %v324 = vmul.f32 %v182, %v301
  %v325 = vmul.f32 %v185, %v303
  %v326 = vmul.f32 %v190, %v305
  %v327 = vmul.f32 %v193, %v307
  %v328 = vmul.f32 %v198, %v309
  %v329 = vmul.f32 %v201, %v311
  %v330 = vmul.f32 %v206, %v313
  %v331 = vmul.f32 %v209, %v315
  %v332 = vmul.f32 %v214, %v317
  %v333 = vmul.f32 %v217, %v319
  %v334 = vmul.f32 %v222, %v321
  %v335 = vmul.f32 %v225, %v323
  %v336 = vrot.slane %v324, 4
  %v337 = vmax.f32 %v324, %v336
  %v338 = vrot.slane %v337, 2
  %v339 = vmax.f32 %v337, %v338
  %v340 = vrot.slane %v339, 1
  %v341 = vmax.f32 %v339, %v340
  %v342 = vrot.slane %v325, 4
  %v343 = vmax.f32 %v325, %v342
  %v344 = vrot.slane %v343, 2
  %v345 = vmax.f32 %v343, %v344
  %v346 = vrot.slane %v345, 1
  %v347 = vmax.f32 %v345, %v346
  %v348 = vrot.slane %v326, 4
  %v349 = vmax.f32 %v326, %v348
  %v350 = vrot.slane %v349, 2
  %v351 = vmax.f32 %v349, %v350
  %v352 = vrot.slane %v351, 1
  %v353 = vmax.f32 %v351, %v352
  %v354 = vrot.slane %v327, 4
  %v355 = vmax.f32 %v327, %v354
  %v356 = vrot.slane %v355, 2
  %v357 = vmax.f32 %v355, %v356
  %v358 = vrot.slane %v357, 1
  %v359 = vmax.f32 %v357, %v358
  %v360 = vrot.slane %v328, 4
  %v361 = vmax.f32 %v328, %v360
  %v362 = vrot.slane %v361, 2
  %v363 = vmax.f32 %v361, %v362
  %v364 = vrot.slane %v363, 1
  %v365 = vmax.f32 %v363, %v364
  %v366 = vrot.slane %v329, 4
  %v367 = vmax.f32 %v329, %v366
  %v368 = vrot.slane %v367, 2
  %v369 = vmax.f32 %v367, %v368
  %v370 = vrot.slane %v369, 1
  %v371 = vmax.f32 %v369, %v370
  %v372 = vrot.slane %v330, 4
  %v373 = vmax.f32 %v330, %v372
  %v374 = vrot.slane %v373, 2
  %v375 = vmax.f32 %v373, %v374
  %v376 = vrot.slane %v375, 1
  %v377 = vmax.f32 %v375, %v376
  %v378 = vrot.slane %v331, 4
  %v379 = vmax.f32 %v331, %v378
  %v380 = vrot.slane %v379, 2
  %v381 = vmax.f32 %v379, %v380
  %v382 = vrot.slane %v381, 1
  %v383 = vmax.f32 %v381, %v382
  %v384 = vrot.slane %v332, 4
  %v385 = vmax.f32 %v332, %v384
  %v386 = vrot.slane %v385, 2
  %v387 = vmax.f32 %v385, %v386
  %v388 = vrot.slane %v387, 1
  %v389 = vmax.f32 %v387, %v388
  %v390 = vrot.slane %v333, 4
  %v391 = vmax.f32 %v333, %v390
  %v392 = vrot.slane %v391, 2
  %v393 = vmax.f32 %v391, %v392
  %v394 = vrot.slane %v393, 1
  %v395 = vmax.f32 %v393, %v394
  %v396 = vrot.slane %v334, 4
  %v397 = vmax.f32 %v334, %v396
  %v398 = vrot.slane %v397, 2
  %v399 = vmax.f32 %v397, %v398
  %v400 = vrot.slane %v399, 1
  %v401 = vmax.f32 %v399, %v400
  %v402 = vrot.slane %v335, 4
  %v403 = vmax.f32 %v335, %v402
  %v404 = vrot.slane %v403, 2
  %v405 = vmax.f32 %v403, %v404
  %v406 = vrot.slane %v405, 1
  %v407 = vmax.f32 %v405, %v406
  %v408 = vpack.c.bf16 %v341, %v341
  %v409 = vpack.c.bf16 %v347, %v347
  %v410 = vpack.c.bf16 %v353, %v353
  %v411 = vpack.c.bf16 %v359, %v359
  %v412 = vpack.c.bf16 %v365, %v365
  %v413 = vpack.c.bf16 %v371, %v371
  %v414 = vpack.c.bf16 %v377, %v377
  %v415 = vpack.c.bf16 %v383, %v383
  %v416 = vpack.c.bf16 %v389, %v389
  %v417 = vpack.c.bf16 %v395, %v395
  %v418 = vpack.c.bf16 %v401, %v401
  %v419 = vpack.c.bf16 %v407, %v407
  %v421 = vlaneseq
  %v422 = vshrl.u32 %v421, 7
  %v423 = vsub.s32 0, %v422
  %v424 = vrot.slane %v62, %v423
  %v438 = vunpack.c.l.b16 %v408
  %v439 = vunpack.c.l.b16 %v409
  %v440 = vunpack.c.l.b16 %v410
  %v441 = vunpack.c.l.b16 %v411
  %v442 = vunpack.c.l.b16 %v412
  %v443 = vunpack.c.l.b16 %v413
  %v444 = vunpack.c.l.b16 %v414
  %v445 = vunpack.c.l.b16 %v415
  %v446 = vunpack.c.l.b16 %v416
  %v447 = vunpack.c.l.b16 %v417
  %v448 = vunpack.c.l.b16 %v418
  %v449 = vunpack.c.l.b16 %v419
  %vm450 = vcmask 1041409
  %v451 = vsel %vm450, %v439, %v438
  %vm452 = vcmask 1042434
  %v453 = vsel %vm452, %v440, %v451
  %vm454 = vcmask 1043459
  %v455 = vsel %vm454, %v441, %v453
  %vm456 = vcmask 1044484
  %v457 = vsel %vm456, %v442, %v455
  %vm458 = vcmask 1045509
  %v459 = vsel %vm458, %v443, %v457
  %vm460 = vcmask 1046534
  %v461 = vsel %vm460, %v444, %v459
  %vm462 = vcmask 1047559
  %v463 = vsel %vm462, %v445, %v461
  %v464 = vsel %vm450, %v447, %v446
  %v465 = vsel %vm452, %v448, %v464
  %v466 = vsel %vm454, %v449, %v465
  %v467 = vpack.c.b16 %v466, %v463
  %v485 = vunpack.c.l.b16 %v46
  %v486 = vunpack.c.l.b16 %v47
  %v487 = vunpack.c.l.b16 %v48
  %v488 = vunpack.c.l.b16 %v49
  %v489 = vunpack.c.l.b16 %v50
  %v490 = vunpack.c.l.b16 %v51
  %v491 = vunpack.c.l.b16 %v52
  %v492 = vunpack.c.l.b16 %v53
  %v493 = vunpack.c.l.b16 %v54
  %v494 = vunpack.c.l.b16 %v55
  %v495 = vunpack.c.l.b16 %v56
  %v496 = vunpack.c.l.b16 %v57
  %v497 = vunpack.c.l.b16 %v58
  %v498 = vunpack.c.l.b16 %v59
  %v499 = vunpack.c.l.b16 %v60
  %v500 = vunpack.c.l.b16 %v61
  %v501 = vpack.c.b16 %v486, %v485
  %v502 = vpack.c.b16 %v488, %v487
  %v503 = vpack.c.b16 %v490, %v489
  %v504 = vpack.c.b16 %v492, %v491
  %v505 = vpack.c.b16 %v494, %v493
  %v506 = vpack.c.b16 %v496, %v495
  %v507 = vpack.c.b16 %v498, %v497
  %v508 = vpack.c.b16 %v500, %v499
  %517 = vmatprep.subr.bf16.mxu0 0
  %518 = vmatpush1.bf16.msra.mxu0 %v501
  %519 = vmatprep.subr.bf16.mxu0 0
  %520 = vmatpush1.bf16.msra.mxu0 %v502
  %521 = vmatprep.subr.bf16.mxu0 0
  %522 = vmatpush1.bf16.msra.mxu0 %v503
  %523 = vmatprep.subr.bf16.mxu0 0
  %524 = vmatpush1.bf16.msra.mxu0 %v504
  %525 = vmatprep.subr.bf16.mxu0 0
  %526 = vmatpush1.bf16.msra.mxu0 %v505
  %527 = vmatprep.subr.bf16.mxu0 0
  %528 = vmatpush1.bf16.msra.mxu0 %v506
  %529 = vmatprep.subr.bf16.mxu0 0
  %530 = vmatpush1.bf16.msra.mxu0 %v507
  %531 = vmatprep.subr.bf16.mxu0 0
  %532 = vmatpush1.bf16.msra.mxu0 %v508
  %533 = vmatprep.subr.bf16.mxu0 0
  %534 = vmatpush1.bf16.msra.mxu0 0
  %535 = vmatprep.subr.bf16.mxu0 0
  %536 = vmatpush1.bf16.msra.mxu0 0
  %537 = vmatprep.subr.bf16.mxu0 0
  %538 = vmatpush1.bf16.msra.mxu0 0
  %539 = vmatprep.subr.bf16.mxu0 0
  %540 = vmatpush1.bf16.msra.mxu0 0
  %541 = vmatprep.subr.bf16.mxu0 0
  %542 = vmatpush1.bf16.msra.mxu0 0
  %543 = vmatprep.subr.bf16.mxu0 0
  %544 = vmatpush1.bf16.msra.mxu0 0
  %545 = vmatprep.subr.bf16.mxu0 0
  %546 = vmatpush1.bf16.msra.mxu0 0
  %547 = vmatprep.subr.bf16.mxu0 0
  %548 = vmatpush1.bf16.msra.mxu0 0
  %549 = vmatprep.mubr.bf16.mxu0 0
  %550 = vmatmul.mubr.bf16.gmra.mrb[0].mxu0 %v467
  %v551 = vpop.f32.mrb[0].mxu0
  %v552 = vadd.f32 %v424, %v551
  %v553 = vpop.f32.mrb[0].mxu0
  %v554 = vpop.f32.mrb[0].mxu0
  %v555 = vadd.f32 %v424, %v554
  %v556 = vpop.f32.mrb[0].mxu0
  %557 = vdwg.mxu0
  %v559 = vcombine.high %v552, %v552
  %v561 = vmul.f32 %v552, %v552
  %vm562 = vcmask 1043456
  %v563 = vsel %vm562, %v561, 0.0
  %564 = vadd.xlane.f32.xlu0 %v563
  %v565 = vpop.xlane.xlu0 %564
  %v566 = vmax.f32 %v565, 1e-24
  %v567 = vrsqrt.pop %v566
  %v568 = vmul.f32 %v552, %v567
  %v569 = vmul.f32 %v559, %v559
  %v570 = vsel %vm562, %v569, 0.0
  %571 = vadd.xlane.f32.xlu0 %v570
  %v572 = vpop.xlane.xlu0 %571
  %v573 = vmax.f32 %v572, 1e-24
  %v574 = vrsqrt.pop %v573
  %v575 = vmul.f32 %v559, %v574
  %v576 = vmul.f32 %v555, %v555
  %v577 = vsel %vm562, %v576, 0.0
  %578 = vadd.xlane.f32.xlu0 %v577
  %v579 = vpop.xlane.xlu0 %578
  %v580 = vmax.f32 %v579, 1e-24
  %v581 = vrsqrt.pop %v580
  %v582 = vmul.f32 %v555, %v581
  %v583 = vmul.f32 %v568, %v575
  %v584 = vsel %vm562, %v583, 0.0
  %585 = vadd.xlane.f32.xlu0 %v584
  %v586 = vpop.xlane.xlu0 %585
  %v587 = vsub.f32 1.0, %v586
  %v588 = vmul.f32 %v568, %v582
  %v589 = vsel %vm562, %v588, 0.0
  %590 = vadd.xlane.f32.xlu0 %v589
  %v591 = vpop.xlane.xlu0 %590
  %v592 = vsub.f32 1.0, %v591
  %v593 = vsub.f32 %v587, %v592
  %594 = vst [vmem:[%s4] sm:$0xf] %v593
  // Predicated region
  $region18: #{forward_triplet.1} parent=0 // pred_check
    _
  $region19: #{forward_triplet.1} parent=0 // pred_check_branch
    %596 = sbr.rel (0) target = $region21
  $region20: #{forward_triplet.1} parent=0 // pred_region
    _
  $region21: #{forward_triplet.1} parent=0 // pred_fallthru
    _
  // Predicated region
  $region22: #{forward_triplet.1} parent=0 // pred_check
    _
  $region23: #{forward_triplet.1} parent=0 // pred_check_branch
    %598 = sbr.rel (0) target = $region25
  $region24: #{forward_triplet.1} parent=0 // pred_region
    _
  $region25: #{forward_triplet.1} parent=0 // pred_fallthru
    _

</llo_original>
